<compile_context>
chip_gen: v5e
topology: v5e:2x2
jax: 0.10.0
libtpu: 0.0.40
codegen_flags: <defaults>
</compile_context>

<pallas_src>
import functools

import jax
import jax.numpy as jnp
from jax import lax
from jax.experimental import pallas as pl
from jax.experimental.pallas import tpu as pltpu


def splat_kernel(pat_ref, wconv_ref, bconv_ref, sel_ref, selt_ref,
                 w1_ref, b1_ref, w2_ref, b2_ref, out_ref, *, radix, channels):
    """Fused grouped conv -> ReLU -> split-sum -> GAP -> fc1 -> ReLU -> fc2 ->
    rSoftMax -> attention-weighted sum, for one batch block (bb elems) per grid step."""
    C = channels

    p = pat_ref[0]                    # (Kpad, bb*HW)  bf16 im2col patches, batch||HW on lanes
    wc = wconv_ref[...]               # (radix*C, Kpad) bf16 block-diagonal conv weight

    # ---- fused grouped 3x3 conv: ONE wide-N MXU matmul for the whole batch block ----
    y = jnp.dot(wc, p, preferred_element_type=jnp.float32)        # (radix*C, bb*HW) f32
    y = jnp.maximum(y + bconv_ref[...], 0.0)

    # ---- radix splits (8-aligned sublane slices) and their sum ----
    ys = [y[r * C:(r + 1) * C, :] for r in range(radix)]
    gap = ys[0]
    for r in range(1, radix):
        gap = gap + ys[r]

    # ---- batched GAP: matmul against the (1/HW)-scaled per-batch selector ----
    #      gs[c, b] = mean over HW of gap for batch b   (lanes > bb are zero padding)
    gs = jnp.dot(gap, sel_ref[...], preferred_element_type=jnp.float32)   # (C, BBP)

    # ---- fc1 / fc2 (grouped 1x1), batched across the block (batch on lanes) ----
    h = jnp.dot(w1_ref[...], gs, preferred_element_type=jnp.float32) + b1_ref[...]
    h = jnp.maximum(h, 0.0)                                               # (inter, BBP)
    a = jnp.dot(w2_ref[...], h, preferred_element_type=jnp.float32) + b2_ref[...]
    #                                                                      (radix*C, BBP)

    # ---- rSoftMax across radix (sigmoid if radix == 1), per batch column ----
    if radix > 1:
        logits = [a[r * C:(r + 1) * C, :] for r in range(radix)]
        m = logits[0]
        for r in range(1, radix):
            m = jnp.maximum(m, logits[r])
        exps = [jnp.exp(l - m) for l in logits]
        s = exps[0]
        for r in range(1, radix):
            s = s + exps[r]
        inv_s = pl.reciprocal(s, approx=True)                   # EUP slot, ~free
        att = [e * inv_s for e in exps]                         # each (C, BBP)
    else:
        att = [jax.nn.sigmoid(a)]

    # ---- expand per-batch attention back onto the lane axis and combine ----
    selt = selt_ref[...]                                        # (BBP, bb*HW), 0/1
    o = jnp.dot(att[0], selt, preferred_element_type=jnp.float32) * ys[0]
    for r in range(1, radix):
        o = o + jnp.dot(att[r], selt, preferred_element_type=jnp.float32) * ys[r]
    out_ref[0] = o.astype(out_ref.dtype)                        # (C, bb*HW)


def _pick_batch_block(batch, per_batch_block_bytes, target_steps=4, vmem_budget=8 << 20):
    """Largest bb dividing `batch` that keeps >= target_steps grid steps and the
    double-buffered per-step block under a conservative VMEM budget (safe for
    v5e's 16 MiB default scoped VMEM and v7x's 64 MiB physical VMEM)."""
    best = 1
    for bb in range(1, batch + 1):
        if batch % bb:
            continue
        if batch // bb < min(target_steps, batch):
            continue
        if 2 * bb * per_batch_block_bytes > vmem_budget:
            continue
        best = max(best, bb)
    return best


def splat_conv2d(x_nchw, params, *, radix, cardinality, channels,
                 kernel_size=3, padding=1, batch_block=None):
    """Wrapper: im2col + one-time weight re-layout in XLA glue; hot path in Pallas."""
    Wc, bc, W1, b1, W2, b2 = params
    B, Cin, H, W = x_nchw.shape
    KH = KW = kernel_size
    GR = radix * cardinality                    # conv groups
    cin_g = Cin // GR
    cout_g = channels * radix // GR
    K = KH * KW * cin_g
    HW = H * W
    GRC = channels * radix                      # conv output channels
    inter = W1.shape[0]
    chp = channels // cardinality
    interp = inter // cardinality
    outp = GRC // cardinality

    Kpad = ((GR * K + 15) // 16) * 16           # pad contraction dim to multiple of 16 (bf16)

    per_batch_bytes = Kpad * HW * 2 + channels * HW * 4
    bb = _pick_batch_block(B, per_batch_bytes) if batch_block is None else batch_block
    assert B % bb == 0, "batch must be divisible by the batch block"
    nblk = B // bb
    BBP = ((max(bb, 8) + 7) // 8) * 8           # lane-padded batch width for the SE path

    # --- glue: bf16 im2col -> (nblk, Kpad, bb*HW); batch & HW merged on the lane axis ---
    # TODO(synk): build the 9 conv taps in-kernel from the raw padded input (pltpu.roll +
    # boundary masks, accumulate 9 small matmuls) to remove the 9x im2col HBM expansion.
    x = jnp.transpose(x_nchw, (0, 2, 3, 1)).astype(jnp.bfloat16)   # cast BEFORE im2col
    xp = jnp.pad(x, ((0, 0), (padding, padding), (padding, padding), (0, 0)))
    cols = []
    for i in range(KH):
        for j in range(KW):
            cols.append(xp[:, i:i + H, j:j + W, :])
    pat = jnp.stack(cols, axis=3)                                  # (B, H, W, KK, Cin)
    pat = pat.reshape(B, HW, KH * KW, GR, cin_g)
    pat = jnp.transpose(pat, (0, 3, 2, 4, 1))                      # (B, GR, KK, cin_g, HW)
    pat = pat.reshape(B, GR * K, HW)
    pat = jnp.pad(pat, ((0, 0), (0, Kpad - GR * K), (0, 0)))
    pat = pat.reshape(nblk, bb, Kpad, HW).transpose(0, 2, 1, 3).reshape(nblk, Kpad, bb * HW)

    # --- glue: conv weight -> block-diagonal (GRC, Kpad), bf16 ---
    wg = jnp.transpose(Wc.reshape(GR, cout_g, cin_g, KH, KW), (0, 1, 3, 4, 2))
    wg = wg.reshape(GR, cout_g, K)
    wbd = jnp.zeros((GRC, Kpad), jnp.float32)
    for g in range(GR):
        wbd = wbd.at[g * cout_g:(g + 1) * cout_g, g * K:(g + 1) * K].set(wg[g])
    wbd = wbd.astype(jnp.bfloat16)
    bconv = bc.reshape(GRC, 1).astype(jnp.float32)

    # --- glue: per-batch GAP selector (scaled 1/HW) and its 0/1 transpose for expansion ---
    bidx = jnp.arange(bb * HW) // HW
    sel = (bidx[:, None] == jnp.arange(BBP)[None, :]).astype(jnp.float32) / HW   # (bbHW, BBP)
    selT = (jnp.arange(BBP)[:, None] == bidx[None, :]).astype(jnp.float32)       # (BBP, bbHW)

    # --- glue: fc1 -> block-diagonal (inter, channels) ---
    w1g = W1.reshape(cardinality, interp, chp)
    w1t = jnp.zeros((inter, channels), jnp.float32)
    for c in range(cardinality):
        w1t = w1t.at[c * interp:(c + 1) * interp, c * chp:(c + 1) * chp].set(w1g[c])
    b1c = b1.reshape(inter, 1).astype(jnp.float32)

    # --- glue: fc2 -> block-diagonal (GRC, inter), rows pre-permuted to rSoftMax /
    #     attention order (row = r*channels + c*chp + i) so in-kernel radix slices line
    #     up with the conv-output splits with no shuffles ---
    w2g = W2.reshape(cardinality, outp, interp)
    w2e = jnp.zeros((GRC, inter), jnp.float32)
    b2p = jnp.zeros((GRC,), jnp.float32)
    for c in range(cardinality):
        for r in range(radix):
            rows = slice(r * channels + c * chp, r * channels + (c + 1) * chp)
            w2e = w2e.at[rows, c * interp:(c + 1) * interp].set(
                w2g[c, r * chp:(r + 1) * chp, :])
            b2p = b2p.at[rows].set(b2[c * outp + r * chp:c * outp + (r + 1) * chp])
    b2c = b2p.reshape(GRC, 1)

    kern = functools.partial(splat_kernel, radix=radix, channels=channels)

    flops = (2 * B * GRC * Kpad * HW                     # fused grouped conv
             + 2 * B * channels * HW                     # GAP selector matmul
             + 2 * B * (inter * channels + GRC * inter)  # fc1 / fc2
             + 2 * B * radix * channels * HW)            # attention expansion + combine
    weight_bytes = (wbd.size * 2 + (bconv.size + sel.size + selT.size + w1t.size
                                    + b1c.size + w2e.size + b2c.size) * 4)
    cost = pl.CostEstimate(
        flops=int(flops),
        transcendentals=int(B * radix * channels + B * channels),
        bytes_accessed=int(pat.size * 2 + B * channels * HW * 4 + weight_bytes))

    out = pl.pallas_call(
        kern,
        out_shape=jax.ShapeDtypeStruct((nblk, channels, bb * HW), jnp.float32),
        grid_spec=pltpu.PrefetchScalarGridSpec(
            num_scalar_prefetch=0,
            grid=(nblk,),
            in_specs=[
                pl.BlockSpec((1, Kpad, bb * HW), lambda n: (n, 0, 0)),
                pl.BlockSpec((GRC, Kpad), lambda n: (0, 0)),
                pl.BlockSpec((GRC, 1), lambda n: (0, 0)),
                pl.BlockSpec((bb * HW, BBP), lambda n: (0, 0)),
                pl.BlockSpec((BBP, bb * HW), lambda n: (0, 0)),
                pl.BlockSpec((inter, channels), lambda n: (0, 0)),
                pl.BlockSpec((inter, 1), lambda n: (0, 0)),
                pl.BlockSpec((GRC, inter), lambda n: (0, 0)),
                pl.BlockSpec((GRC, 1), lambda n: (0, 0)),
            ],
            out_specs=pl.BlockSpec((1, channels, bb * HW), lambda n: (n, 0, 0)),
        ),
        compiler_params=pltpu.CompilerParams(
            dimension_semantics=("parallel",),
            vmem_limit_bytes=32 * 1024 * 1024),
        cost_estimate=cost,
    )(pat, wbd, bconv, sel, selT, w1t, b1c, w2e, b2c)

    # Un-merge the batch block; HW stays the last (lane-dense) axis throughout.
    out = out.reshape(nblk, channels, bb, HW).transpose(0, 2, 1, 3)
    return out.reshape(B, channels, H, W)


def splat_conv2d_reference(x, params, *, radix, cardinality, channels):
    """Pure-JAX reference replicating the PyTorch forward (NCHW)."""
    Wc, bc, W1, b1, W2, b2 = params
    B = x.shape[0]
    GR = radix * cardinality
    dn = ("NCHW", "OIHW", "NCHW")
    prec = lax.Precision.HIGHEST
    y = lax.conv_general_dilated(x, Wc, (1, 1), ((1, 1), (1, 1)),
                                 dimension_numbers=dn, feature_group_count=GR,
                                 precision=prec)
    y = jnp.maximum(y + bc[None, :, None, None], 0.0)
    splits = [y[:, r * channels:(r + 1) * channels] for r in range(radix)]
    gap = splits[0]
    for r in range(1, radix):
        gap = gap + splits[r]
    gap = jnp.mean(gap, axis=(2, 3), keepdims=True)
    g = lax.conv_general_dilated(gap, W1, (1, 1), "VALID",
                                 dimension_numbers=dn, feature_group_count=cardinality,
                                 precision=prec)
    g = jnp.maximum(g + b1[None, :, None, None], 0.0)
    a = lax.conv_general_dilated(g, W2, (1, 1), "VALID",
                                 dimension_numbers=dn, feature_group_count=cardinality,
                                 precision=prec)
    a = a + b2[None, :, None, None]
    if radix > 1:
        a = jnp.transpose(a.reshape(B, cardinality, radix, -1), (0, 2, 1, 3))
        a = jax.nn.softmax(a, axis=1).reshape(B, -1, 1, 1)
    else:
        a = jax.nn.sigmoid(a.reshape(B, -1, 1, 1))
    attens = [a[:, r * channels:(r + 1) * channels] for r in range(radix)]
    out = attens[0] * splits[0]
    for r in range(1, radix):
        out = out + attens[r] * splits[r]
    return out


if __name__ == "__main__":
    # SplAtConv2d(in_channels=8, channels=8, kernel_size=3, padding=1, groups=2, radix=2)
    B, Cin, H, W = 8, 8, 16, 16
    channels, radix, cardinality, reduction_factor = 8, 2, 2, 4
    inter = max(Cin * radix // reduction_factor, 32)   # = 32

    key = jax.random.PRNGKey(0)
    k = jax.random.split(key, 7)
    Wc = 0.1 * jax.random.normal(k[0], (channels * radix, Cin // (radix * cardinality), 3, 3), jnp.float32)
    bc = 0.1 * jax.random.normal(k[1], (channels * radix,), jnp.float32)
    W1 = 0.1 * jax.random.normal(k[2], (inter, channels // cardinality, 1, 1), jnp.float32)
    b1 = 0.1 * jax.random.normal(k[3], (inter,), jnp.float32)
    W2 = 0.1 * jax.random.normal(k[4], (channels * radix, inter // cardinality, 1, 1), jnp.float32)
    b2 = 0.1 * jax.random.normal(k[5], (channels * radix,), jnp.float32)
    x = jax.random.normal(k[6], (B, Cin, H, W), jnp.float32)
    params = (Wc, bc, W1, b1, W2, b2)

    out = splat_conv2d(x, params, radix=radix, cardinality=cardinality, channels=channels)
    out = jax.block_until_ready(out)

    # The kernel runs the conv with bf16 operands (f32 accumulation); feed the reference the
    # same bf16-quantized conv operands. Tolerance accounts for MXU default-precision f32
    # dots in the SE path and the approx EUP reciprocal in the softmax.
    xq = x.astype(jnp.bfloat16).astype(jnp.float32)
    Wcq = Wc.astype(jnp.bfloat16).astype(jnp.float32)
    ref = splat_conv2d_reference(xq, (Wcq, bc, W1, b1, W2, b2),
                                 radix=radix, cardinality=cardinality, channels=channels)
    assert out.shape == (B, channels, H, W)
    max_err = float(jnp.max(jnp.abs(out - ref)))
    assert jnp.allclose(out, ref, atol=5e-3, rtol=5e-3), max_err
    print("KERNEL_OK")
</pallas_src>

<mosaic_0001>
module attributes {stable_mosaic.version = 11 : i64} {
  func.func @splat_kernel(%arg0: i32, %arg1: memref<1x80x512xbf16, #tpu.memory_space<vmem>>, %arg2: memref<16x80xbf16, #tpu.memory_space<vmem>>, %arg3: memref<16x1xf32, #tpu.memory_space<vmem>>, %arg4: memref<512x8xf32, #tpu.memory_space<vmem>>, %arg5: memref<8x512xf32, #tpu.memory_space<vmem>>, %arg6: memref<32x8xf32, #tpu.memory_space<vmem>>, %arg7: memref<32x1xf32, #tpu.memory_space<vmem>>, %arg8: memref<16x32xf32, #tpu.memory_space<vmem>>, %arg9: memref<16x1xf32, #tpu.memory_space<vmem>>, %arg10: memref<1x8x512xf32, #tpu.memory_space<vmem>>) attributes {dimension_semantics = [#tpu.dimension_semantics<parallel>], iteration_bounds = array<i64: 4>, scalar_prefetch = 0 : i64, scratch_operands = 0 : i64, tpu.core_type = #tpu.core_type<tc>, window_params = [{transform_indices = @transform_0, window_bounds = array<i64: 1, 80, 512>}, {pipeline_mode = #tpu.pipeline_mode<synchronous>, transform_indices = @transform_1, window_bounds = array<i64: 16, 80>}, {pipeline_mode = #tpu.pipeline_mode<synchronous>, transform_indices = @transform_2, window_bounds = array<i64: 16, 1>}, {pipeline_mode = #tpu.pipeline_mode<synchronous>, transform_indices = @transform_3, window_bounds = array<i64: 512, 8>}, {pipeline_mode = #tpu.pipeline_mode<synchronous>, transform_indices = @transform_4, window_bounds = array<i64: 8, 512>}, {pipeline_mode = #tpu.pipeline_mode<synchronous>, transform_indices = @transform_5, window_bounds = array<i64: 32, 8>}, {pipeline_mode = #tpu.pipeline_mode<synchronous>, transform_indices = @transform_6, window_bounds = array<i64: 32, 1>}, {pipeline_mode = #tpu.pipeline_mode<synchronous>, transform_indices = @transform_7, window_bounds = array<i64: 16, 32>}, {pipeline_mode = #tpu.pipeline_mode<synchronous>, transform_indices = @transform_8, window_bounds = array<i64: 16, 1>}, {transform_indices = @transform_9, window_bounds = array<i64: 1, 8, 512>}]} {
    %c0 = arith.constant 0 : index
    %c0_0 = arith.constant 0 : index
    %c0_1 = arith.constant 0 : index
    %0 = vector.load %arg1[%c0, %c0_0, %c0_1] : memref<1x80x512xbf16, #tpu.memory_space<vmem>>, vector<1x80x512xbf16>
    %1 = vector.shape_cast %0 : vector<1x80x512xbf16> to vector<80x512xbf16>
    %c0_2 = arith.constant 0 : index
    %c0_3 = arith.constant 0 : index
    %2 = vector.load %arg2[%c0_2, %c0_3] : memref<16x80xbf16, #tpu.memory_space<vmem>>, vector<16x80xbf16>
    %cst = arith.constant dense<0.000000e+00> : vector<16x512xf32>
    %3 = tpu.matmul %2, %1, %cst {dimension_numbers = #tpu.dot_dimension_numbers<[1], [0], [0], [1], [0, 0, 1, 1], [], []>} : vector<16x80xbf16>, vector<80x512xbf16>, vector<16x512xf32> -> vector<16x512xf32>
    %c0_4 = arith.constant 0 : index
    %c0_5 = arith.constant 0 : index
    %4 = vector.load %arg3[%c0_4, %c0_5] : memref<16x1xf32, #tpu.memory_space<vmem>>, vector<16x1xf32>
    %5 = vector.broadcast %4 : vector<16x1xf32> to vector<16x512xf32>
    %6 = arith.addf %3, %5 : vector<16x512xf32>
    %cst_6 = arith.constant 0.000000e+00 : f32
    %7 = vector.broadcast %cst_6 : f32 to vector<16x512xf32>
    %8 = arith.maximumf %6, %7 : vector<16x512xf32>
    %9 = vector.extract_strided_slice %8 {offsets = [0, 0], sizes = [8, 512], strides = [1, 1]} : vector<16x512xf32> to vector<8x512xf32>
    %10 = vector.extract_strided_slice %8 {offsets = [8, 0], sizes = [8, 512], strides = [1, 1]} : vector<16x512xf32> to vector<8x512xf32>
    %11 = arith.addf %9, %10 : vector<8x512xf32>
    %c0_7 = arith.constant 0 : index
    %c0_8 = arith.constant 0 : index
    %12 = vector.load %arg4[%c0_7, %c0_8] : memref<512x8xf32, #tpu.memory_space<vmem>>, vector<512x8xf32>
    %cst_9 = arith.constant dense<0.000000e+00> : vector<8x8xf32>
    %13 = tpu.matmul %11, %12, %cst_9 {dimension_numbers = #tpu.dot_dimension_numbers<[1], [0], [0], [1], [0, 0, 1, 1], [], []>} : vector<8x512xf32>, vector<512x8xf32>, vector<8x8xf32> -> vector<8x8xf32>
    %c0_10 = arith.constant 0 : index
    %c0_11 = arith.constant 0 : index
    %14 = vector.load %arg6[%c0_10, %c0_11] : memref<32x8xf32, #tpu.memory_space<vmem>>, vector<32x8xf32>
    %cst_12 = arith.constant dense<0.000000e+00> : vector<32x8xf32>
    %15 = tpu.matmul %14, %13, %cst_12 {dimension_numbers = #tpu.dot_dimension_numbers<[1], [0], [0], [1], [0, 0, 1, 1], [], []>} : vector<32x8xf32>, vector<8x8xf32>, vector<32x8xf32> -> vector<32x8xf32>
    %c0_13 = arith.constant 0 : index
    %c0_14 = arith.constant 0 : index
    %16 = vector.load %arg7[%c0_13, %c0_14] : memref<32x1xf32, #tpu.memory_space<vmem>>, vector<32x1xf32>
    %17 = vector.broadcast %16 : vector<32x1xf32> to vector<32x8xf32>
    %18 = arith.addf %15, %17 : vector<32x8xf32>
    %cst_15 = arith.constant 0.000000e+00 : f32
    %19 = vector.broadcast %cst_15 : f32 to vector<32x8xf32>
    %20 = arith.maximumf %18, %19 : vector<32x8xf32>
    %c0_16 = arith.constant 0 : index
    %c0_17 = arith.constant 0 : index
    %21 = vector.load %arg8[%c0_16, %c0_17] : memref<16x32xf32, #tpu.memory_space<vmem>>, vector<16x32xf32>
    %cst_18 = arith.constant dense<0.000000e+00> : vector<16x8xf32>
    %22 = tpu.matmul %21, %20, %cst_18 {dimension_numbers = #tpu.dot_dimension_numbers<[1], [0], [0], [1], [0, 0, 1, 1], [], []>} : vector<16x32xf32>, vector<32x8xf32>, vector<16x8xf32> -> vector<16x8xf32>
    %c0_19 = arith.constant 0 : index
    %c0_20 = arith.constant 0 : index
    %23 = vector.load %arg9[%c0_19, %c0_20] : memref<16x1xf32, #tpu.memory_space<vmem>>, vector<16x1xf32>
    %24 = vector.broadcast %23 : vector<16x1xf32> to vector<16x8xf32>
    %25 = arith.addf %22, %24 : vector<16x8xf32>
    %26 = vector.extract_strided_slice %25 {offsets = [0, 0], sizes = [8, 8], strides = [1, 1]} : vector<16x8xf32> to vector<8x8xf32>
    %27 = vector.extract_strided_slice %25 {offsets = [8, 0], sizes = [8, 8], strides = [1, 1]} : vector<16x8xf32> to vector<8x8xf32>
    %28 = arith.maximumf %26, %27 : vector<8x8xf32>
    %29 = arith.subf %26, %28 : vector<8x8xf32>
    %30 = math.exp %29 : vector<8x8xf32>
    %31 = arith.subf %27, %28 : vector<8x8xf32>
    %32 = math.exp %31 : vector<8x8xf32>
    %33 = arith.addf %30, %32 : vector<8x8xf32>
    %34 = tpu.reciprocal %33 {approx = true} : vector<8x8xf32> -> vector<8x8xf32>
    %35 = arith.mulf %30, %34 : vector<8x8xf32>
    %36 = arith.mulf %32, %34 : vector<8x8xf32>
    %c0_21 = arith.constant 0 : index
    %c0_22 = arith.constant 0 : index
    %37 = vector.load %arg5[%c0_21, %c0_22] : memref<8x512xf32, #tpu.memory_space<vmem>>, vector<8x512xf32>
    %cst_23 = arith.constant dense<0.000000e+00> : vector<8x512xf32>
    %38 = tpu.matmul %35, %37, %cst_23 {dimension_numbers = #tpu.dot_dimension_numbers<[1], [0], [0], [1], [0, 0, 1, 1], [], []>} : vector<8x8xf32>, vector<8x512xf32>, vector<8x512xf32> -> vector<8x512xf32>
    %39 = arith.mulf %38, %9 : vector<8x512xf32>
    %cst_24 = arith.constant dense<0.000000e+00> : vector<8x512xf32>
    %40 = tpu.matmul %36, %37, %cst_24 {dimension_numbers = #tpu.dot_dimension_numbers<[1], [0], [0], [1], [0, 0, 1, 1], [], []>} : vector<8x8xf32>, vector<8x512xf32>, vector<8x512xf32> -> vector<8x512xf32>
    %41 = arith.mulf %40, %10 : vector<8x512xf32>
    %42 = arith.addf %39, %41 : vector<8x512xf32>
    %c0_25 = arith.constant 0 : index
    %c0_26 = arith.constant 0 : index
    %c0_27 = arith.constant 0 : index
    %43 = vector.load %arg10[%c0_25, %c0_26, %c0_27] : memref<1x8x512xf32, #tpu.memory_space<vmem>>, vector<1x8x512xf32>
    %44 = vector.shape_cast %43 : vector<1x8x512xf32> to vector<8x512xf32>
    %45 = vector.shape_cast %42 : vector<8x512xf32> to vector<1x8x512xf32>
    tpu.vector_store %arg10[%c0_25, %c0_26, %c0_27], %45 {strides = array<i32>} : memref<1x8x512xf32, #tpu.memory_space<vmem>>, vector<1x8x512xf32>,
    return
  }
  func.func @transform_0(%arg0: i32) -> (i32, i32, i32) {
    %c0_i32 = arith.constant 0 : i32
    %c0_i32_0 = arith.constant 0 : i32
    %c0_i32_1 = arith.constant 0 : i32
    return %arg0, %c0_i32, %c0_i32_0 : i32, i32, i32
  }
  func.func @transform_1(%arg0: i32) -> (i32, i32) {
    %c0_i32 = arith.constant 0 : i32
    %c0_i32_0 = arith.constant 0 : i32
    %c0_i32_1 = arith.constant 0 : i32
    return %c0_i32, %c0_i32_0 : i32, i32
  }
  func.func @transform_2(%arg0: i32) -> (i32, i32) {
    %c0_i32 = arith.constant 0 : i32
    %c0_i32_0 = arith.constant 0 : i32
    %c0_i32_1 = arith.constant 0 : i32
    return %c0_i32, %c0_i32_0 : i32, i32
  }
  func.func @transform_3(%arg0: i32) -> (i32, i32) {
    %c0_i32 = arith.constant 0 : i32
    %c0_i32_0 = arith.constant 0 : i32
    %c0_i32_1 = arith.constant 0 : i32
    return %c0_i32, %c0_i32_0 : i32, i32
  }
  func.func @transform_4(%arg0: i32) -> (i32, i32) {
    %c0_i32 = arith.constant 0 : i32
    %c0_i32_0 = arith.constant 0 : i32
    %c0_i32_1 = arith.constant 0 : i32
    return %c0_i32, %c0_i32_0 : i32, i32
  }
  func.func @transform_5(%arg0: i32) -> (i32, i32) {
    %c0_i32 = arith.constant 0 : i32
    %c0_i32_0 = arith.constant 0 : i32
    %c0_i32_1 = arith.constant 0 : i32
    return %c0_i32, %c0_i32_0 : i32, i32
  }
  func.func @transform_6(%arg0: i32) -> (i32, i32) {
    %c0_i32 = arith.constant 0 : i32
    %c0_i32_0 = arith.constant 0 : i32
    %c0_i32_1 = arith.constant 0 : i32
    return %c0_i32, %c0_i32_0 : i32, i32
  }
  func.func @transform_7(%arg0: i32) -> (i32, i32) {
    %c0_i32 = arith.constant 0 : i32
    %c0_i32_0 = arith.constant 0 : i32
    %c0_i32_1 = arith.constant 0 : i32
    return %c0_i32, %c0_i32_0 : i32, i32
  }
  func.func @transform_8(%arg0: i32) -> (i32, i32) {
    %c0_i32 = arith.constant 0 : i32
    %c0_i32_0 = arith.constant 0 : i32
    %c0_i32_1 = arith.constant 0 : i32
    return %c0_i32, %c0_i32_0 : i32, i32
  }
  func.func @transform_9(%arg0: i32) -> (i32, i32, i32) {
    %c0_i32 = arith.constant 0 : i32
    %c0_i32_0 = arith.constant 0 : i32
    %c0_i32_1 = arith.constant 0 : i32
    return %arg0, %c0_i32, %c0_i32_0 : i32, i32, i32
  }
}

</mosaic_0001>

<llo_original>
// kernel: tpu_custom_call.1
$region0: #{tpu_custom_call.1}
  #allocation0 [shape = 'u32[]', space=smem, size = 0x4, offset = 0x4, fixed_abs, tag = 'smem constant byte address 0x4 - core index']
  #allocation1 [shape = 'u32[72,128]{1,0:T(1,128)}', space=vmem, size = 0x9000, scoped, tag = 'internal scratch']
  %s0 = inlined_call_operand.vmem [shape: bf16[4,80,512], index: 0, kind: input, shape index: {}]
  %s1 = inlined_call_operand.hbm [shape: bf16[16,80], index: 1, kind: input, shape index: {}]
  %s2 = inlined_call_operand.vmem [shape: f32[16,1], index: 2, kind: input, shape index: {}]
  %s3 = inlined_call_operand.vmem [shape: f32[512,8], index: 3, kind: input, shape index: {}]
  %s4 = inlined_call_operand.hbm [shape: f32[8,512], index: 4, kind: input, shape index: {}]
  %s5 = inlined_call_operand.vmem [shape: f32[32,8], index: 5, kind: input, shape index: {}]
  %s6 = inlined_call_operand.vmem [shape: f32[32,1], index: 6, kind: input, shape index: {}]
  %s7 = inlined_call_operand.vmem [shape: f32[16,32], index: 7, kind: input, shape index: {}]
  %s8 = inlined_call_operand.vmem [shape: f32[16,1], index: 8, kind: input, shape index: {}]
  %s9 = inlined_call_operand.hbm [shape: f32[4,8,512], index: 9, kind: output, shape index: {}]
  %s10 = sld [smem:[#allocation0]]
  $region77: #{tpu_custom_call.1} parent=0
    _
  %s12 = ssub.s32 1, %s10
  %s13 = scalar_select 0, %s12, %s10
  $region1: #{tpu_custom_call.1} parent=0
    #allocation2 [shape = 'u8[4096]{0}', space=vmem, size = 0x1000, scoped, tag = 'input window, operand 1, single buffered']
    #allocation3 [shape = 's32[2]{0}', space=sflag, size = 0x8, scoped, tag = 'scoped memory for tpu_custom_call.1']
    #allocation4 [shape = 's32[2]{0}', space=sflag, size = 0x8, scoped, tag = 'scoped memory for tpu_custom_call.1']
    #allocation5 [shape = 'u8[16384]{0}', space=vmem, size = 0x4000, scoped, tag = 'input window, operand 4, single buffered']
    #allocation6 [shape = 's32[1]{0}', space=sflag, size = 0x4, scoped, tag = 'scoped memory for tpu_custom_call.1']
    #allocation7 [shape = 'u8[32768]{0}', space=vmem, size = 0x8000, scoped, tag = 'output window, operand 0']
    %14 = vsyncpa [#allocation3], 0
    %15 = vsyncpa [#allocation6], 0
    %16 = vsyncpa [#allocation4], 0
    %s17 = scalar_lea.sflag [#allocation4], 1
    %18 = vsyncpa %s17, 0
    loop: start=0, step=1, limit=6
    $region2: #{tpu_custom_call.1} parent=1 // loop_pre_header
      _
    $region3: #{tpu_custom_call.1} parent=1 // loop_header
      %s20 = sphi 0, %s24
      %p21 = scmp.ge.s32.totalorder %s20, 6
      %s30 = sphi 0, %s32
      %s33 = sphi 0, %s30
      %s34 = sphi 0, %s33
      %s50 = sphi 0, %s34
      %s54 = sphi 0, %s54
      %s56 = sphi 0, %s54
      %s57 = sphi 0, %s56
      %s71 = sphi 0, %s57
      %s75 = sphi 0, %s75
      %s77 = sphi 0, %s75
      %s78 = sphi 0, %s77
      %s92 = sphi 0, %s78
      %s96 = sphi 0, %s96
      %s98 = sphi 0, %s96
      %s99 = sphi 0, %s98
      %s113 = sphi 0, %s99
      %s117 = sphi 0, %s117
      %s119 = sphi 0, %s117
      %s120 = sphi 0, %s119
      %s134 = sphi 0, %s120
      %s138 = sphi 0, %s138
      %s140 = sphi 0, %s138
      %s141 = sphi 0, %s140
      %s155 = sphi 0, %s141
      %s159 = sphi 0, %s159
      %s161 = sphi 0, %s159
      %s162 = sphi 0, %s161
      %s176 = sphi 0, %s162
      %s180 = sphi 0, %s180
      %s182 = sphi 0, %s180
      %s183 = sphi 0, %s182
      %s197 = sphi 0, %s183
      %s201 = sphi 0, %s201
      %s203 = sphi 0, %s201
      %s204 = sphi 0, %s203
      %s218 = sphi 0, %s204
      %s224 = sphi 0, %s226
      %s227 = sphi 0, %s224
      %s228 = sphi 0, %s227
      %s244 = sphi 0, %s228
    $region4: #{tpu_custom_call.1} parent=1 // loop_header_branch
      %23 = sbr.rel (%p21) target = $region8
    $region5: #{tpu_custom_call.1} parent=1 // loop_body
      %s25 = ssub.s32 %s20, 1
      %s26 = ssub.s32 %s20, 2
      %s27 = sadd.s32 %s20, 1
      %s28 = ssub.s32 %s20, %s27
      %p29 = scmp.eq.s32.totalorder %s28, 0
      %s31 = sadd.s32 %s30, 1
      %s32 = scalar_select %p29, %s30, %s31
      %p35 = pneg %p29
      %p36 = scmp.eq.s32.totalorder %s20, 3
      %p37 = por %p35, %p36
      %p38 = scmp.ne.s32.totalorder %s30, %s33
      %p39 = scmp.eq.s32.totalorder %s20, 0
      %p40 = por %p38, %p39
      %p41 = scmp.ne.s32.totalorder %s30, %s33
      %p42 = scmp.eq.s32.totalorder %s25, 3
      %p43 = por %p41, %p42
      %p44 = scmp.ne.s32.totalorder %s33, %s34
      %p45 = scmp.eq.s32.totalorder %s25, 0
      %p46 = por %p44, %p45
      %p47 = scmp.ne.s32.totalorder %s33, %s34
      %p48 = scmp.eq.s32.totalorder %s26, 3
      %p49 = por %p47, %p48
      %p51 = scmp.ne.s32.totalorder %s34, %s50
      %p52 = scmp.eq.s32.totalorder %s26, 0
      %p53 = por %p51, %p52
      %s55 = sadd.s32 %s54, 1
      %p58 = scmp.eq.s32.totalorder %s20, 3
      %p59 = scmp.ne.s32.totalorder %s54, %s56
      %p60 = scmp.eq.s32.totalorder %s20, 0
      %p61 = por %p59, %p60
      %p62 = scmp.ne.s32.totalorder %s54, %s56
      %p63 = scmp.eq.s32.totalorder %s25, 3
      %p64 = por %p62, %p63
      %p65 = scmp.ne.s32.totalorder %s56, %s57
      %p66 = scmp.eq.s32.totalorder %s25, 0
      %p67 = por %p65, %p66
      %p68 = scmp.ne.s32.totalorder %s56, %s57
      %p69 = scmp.eq.s32.totalorder %s26, 3
      %p70 = por %p68, %p69
      %p72 = scmp.ne.s32.totalorder %s57, %s71
      %p73 = scmp.eq.s32.totalorder %s26, 0
      %p74 = por %p72, %p73
      %s76 = sadd.s32 %s75, 1
      %p79 = scmp.eq.s32.totalorder %s20, 3
      %p80 = scmp.ne.s32.totalorder %s75, %s77
      %p81 = scmp.eq.s32.totalorder %s20, 0
      %p82 = por %p80, %p81
      %p83 = scmp.ne.s32.totalorder %s75, %s77
      %p84 = scmp.eq.s32.totalorder %s25, 3
      %p85 = por %p83, %p84
      %p86 = scmp.ne.s32.totalorder %s77, %s78
      %p87 = scmp.eq.s32.totalorder %s25, 0
      %p88 = por %p86, %p87
      %p89 = scmp.ne.s32.totalorder %s77, %s78
      %p90 = scmp.eq.s32.totalorder %s26, 3
      %p91 = por %p89, %p90
      %p93 = scmp.ne.s32.totalorder %s78, %s92
      %p94 = scmp.eq.s32.totalorder %s26, 0
      %p95 = por %p93, %p94
      %s97 = sadd.s32 %s96, 1
      %p100 = scmp.eq.s32.totalorder %s20, 3
      %p101 = scmp.ne.s32.totalorder %s96, %s98
      %p102 = scmp.eq.s32.totalorder %s20, 0
      %p103 = por %p101, %p102
      %p104 = scmp.ne.s32.totalorder %s96, %s98
      %p105 = scmp.eq.s32.totalorder %s25, 3
      %p106 = por %p104, %p105
      %p107 = scmp.ne.s32.totalorder %s98, %s99
      %p108 = scmp.eq.s32.totalorder %s25, 0
      %p109 = por %p107, %p108
      %p110 = scmp.ne.s32.totalorder %s98, %s99
      %p111 = scmp.eq.s32.totalorder %s26, 3
      %p112 = por %p110, %p111
      %p114 = scmp.ne.s32.totalorder %s99, %s113
      %p115 = scmp.eq.s32.totalorder %s26, 0
      %p116 = por %p114, %p115
      %s118 = sadd.s32 %s117, 1
      %p121 = scmp.eq.s32.totalorder %s20, 3
      %p122 = scmp.ne.s32.totalorder %s117, %s119
      %p123 = scmp.eq.s32.totalorder %s20, 0
      %p124 = por %p122, %p123
      %p125 = scmp.ne.s32.totalorder %s117, %s119
      %p126 = scmp.eq.s32.totalorder %s25, 3
      %p127 = por %p125, %p126
      %p128 = scmp.ne.s32.totalorder %s119, %s120
      %p129 = scmp.eq.s32.totalorder %s25, 0
      %p130 = por %p128, %p129
      %p131 = scmp.ne.s32.totalorder %s119, %s120
      %p132 = scmp.eq.s32.totalorder %s26, 3
      %p133 = por %p131, %p132
      %p135 = scmp.ne.s32.totalorder %s120, %s134
      %p136 = scmp.eq.s32.totalorder %s26, 0
      %p137 = por %p135, %p136
      %s139 = sadd.s32 %s138, 1
      %p142 = scmp.eq.s32.totalorder %s20, 3
      %p143 = scmp.ne.s32.totalorder %s138, %s140
      %p144 = scmp.eq.s32.totalorder %s20, 0
      %p145 = por %p143, %p144
      %p146 = scmp.ne.s32.totalorder %s138, %s140
      %p147 = scmp.eq.s32.totalorder %s25, 3
      %p148 = por %p146, %p147
      %p149 = scmp.ne.s32.totalorder %s140, %s141
      %p150 = scmp.eq.s32.totalorder %s25, 0
      %p151 = por %p149, %p150
      %p152 = scmp.ne.s32.totalorder %s140, %s141
      %p153 = scmp.eq.s32.totalorder %s26, 3
      %p154 = por %p152, %p153
      %p156 = scmp.ne.s32.totalorder %s141, %s155
      %p157 = scmp.eq.s32.totalorder %s26, 0
      %p158 = por %p156, %p157
      %s160 = sadd.s32 %s159, 1
      %p163 = scmp.eq.s32.totalorder %s20, 3
      %p164 = scmp.ne.s32.totalorder %s159, %s161
      %p165 = scmp.eq.s32.totalorder %s20, 0
      %p166 = por %p164, %p165
      %p167 = scmp.ne.s32.totalorder %s159, %s161
      %p168 = scmp.eq.s32.totalorder %s25, 3
      %p169 = por %p167, %p168
      %p170 = scmp.ne.s32.totalorder %s161, %s162
      %p171 = scmp.eq.s32.totalorder %s25, 0
      %p172 = por %p170, %p171
      %p173 = scmp.ne.s32.totalorder %s161, %s162
      %p174 = scmp.eq.s32.totalorder %s26, 3
      %p175 = por %p173, %p174
      %p177 = scmp.ne.s32.totalorder %s162, %s176
      %p178 = scmp.eq.s32.totalorder %s26, 0
      %p179 = por %p177, %p178
      %s181 = sadd.s32 %s180, 1
      %p184 = scmp.eq.s32.totalorder %s20, 3
      %p185 = scmp.ne.s32.totalorder %s180, %s182
      %p186 = scmp.eq.s32.totalorder %s20, 0
      %p187 = por %p185, %p186
      %p188 = scmp.ne.s32.totalorder %s180, %s182
      %p189 = scmp.eq.s32.totalorder %s25, 3
      %p190 = por %p188, %p189
      %p191 = scmp.ne.s32.totalorder %s182, %s183
      %p192 = scmp.eq.s32.totalorder %s25, 0
      %p193 = por %p191, %p192
      %p194 = scmp.ne.s32.totalorder %s182, %s183
      %p195 = scmp.eq.s32.totalorder %s26, 3
      %p196 = por %p194, %p195
      %p198 = scmp.ne.s32.totalorder %s183, %s197
      %p199 = scmp.eq.s32.totalorder %s26, 0
      %p200 = por %p198, %p199
      %s202 = sadd.s32 %s201, 1
      %p205 = scmp.eq.s32.totalorder %s20, 3
      %p206 = scmp.ne.s32.totalorder %s201, %s203
      %p207 = scmp.eq.s32.totalorder %s20, 0
      %p208 = por %p206, %p207
      %p209 = scmp.ne.s32.totalorder %s201, %s203
      %p210 = scmp.eq.s32.totalorder %s25, 3
      %p211 = por %p209, %p210
      %p212 = scmp.ne.s32.totalorder %s203, %s204
      %p213 = scmp.eq.s32.totalorder %s25, 0
      %p214 = por %p212, %p213
      %p215 = scmp.ne.s32.totalorder %s203, %s204
      %p216 = scmp.eq.s32.totalorder %s26, 3
      %p217 = por %p215, %p216
      %p219 = scmp.ne.s32.totalorder %s204, %s218
      %p220 = scmp.eq.s32.totalorder %s26, 0
      %p221 = por %p219, %p220
      %s222 = ssub.s32 %s20, %s27
      %p223 = scmp.eq.s32.totalorder %s222, 0
      %s225 = sadd.s32 %s224, 1
      %s226 = scalar_select %p223, %s224, %s225
      %p229 = pneg %p223
      %p230 = scmp.eq.s32.totalorder %s20, 3
      %p231 = por %p229, %p230
      %p232 = scmp.ne.s32.totalorder %s224, %s227
      %p233 = scmp.eq.s32.totalorder %s20, 0
      %p234 = por %p232, %p233
      %p235 = scmp.ne.s32.totalorder %s224, %s227
      %p236 = scmp.eq.s32.totalorder %s25, 3
      %p237 = por %p235, %p236
      %p238 = scmp.ne.s32.totalorder %s227, %s228
      %p239 = scmp.eq.s32.totalorder %s25, 0
      %p240 = por %p238, %p239
      %p241 = scmp.ne.s32.totalorder %s227, %s228
      %p242 = scmp.eq.s32.totalorder %s26, 3
      %p243 = por %p241, %p242
      %p245 = scmp.ne.s32.totalorder %s228, %s244
      %p246 = scmp.eq.s32.totalorder %s26, 0
      %p247 = por %p245, %p246
      %p248 = scmp.le.s32.totalorder 1, %s20
      %p249 = scmp.lt.s32.totalorder %s20, 5
      %p250 = pnand %p248, %p249
      %p251 = pneg %p250
      // Predicated region
      $region9: #{tpu_custom_call.1} parent=5 // pred_check
        _
      $region10: #{tpu_custom_call.1} parent=5 // pred_check_branch
        %253 = sbr.rel (%p250) target = $region12
      $region11: #{tpu_custom_call.1} parent=5 // pred_region
        %s254 = ssub.s32 %s20, 1
        // Predicated region
        $region13: #{tpu_custom_call.1} parent=11 // pred_check
          %p255 = pneg %p67
        $region14: #{tpu_custom_call.1} parent=11 // pred_check_branch
          %257 = sbr.rel (%p255) target = $region16
        $region15: #{tpu_custom_call.1} parent=11 // pred_region
          %259 = vsyncadd [#allocation3], 0
          %s260 = sshll.u32 %s1, 4
          %s261 = int_to_ptr.hbm [resolvable:$true] %s260
          %s262 = sshll.u32 [#allocation2], 4
          %s263 = int_to_ptr.vmem [resolvable:$true] %s262
          %268 = dma.hbm_to_vmem [thread:$0]  %s261, 128, %s263, [#allocation3], 64, 64, 4
        $region16: #{tpu_custom_call.1} parent=11 // pred_fallthru
          _
        // Predicated region
        $region17: #{tpu_custom_call.1} parent=11 // pred_check
          %p269 = pneg %p88
        $region18: #{tpu_custom_call.1} parent=11 // pred_check_branch
          %271 = sbr.rel (%p269) target = $region20
        $region19: #{tpu_custom_call.1} parent=11 // pred_region
          _
        $region20: #{tpu_custom_call.1} parent=11 // pred_fallthru
          _
        // Predicated region
        $region21: #{tpu_custom_call.1} parent=11 // pred_check
          %p272 = pneg %p109
        $region22: #{tpu_custom_call.1} parent=11 // pred_check_branch
          %274 = sbr.rel (%p272) target = $region24
        $region23: #{tpu_custom_call.1} parent=11 // pred_region
          _
        $region24: #{tpu_custom_call.1} parent=11 // pred_fallthru
          _
        // Predicated region
        $region25: #{tpu_custom_call.1} parent=11 // pred_check
          %p275 = pneg %p130
        $region26: #{tpu_custom_call.1} parent=11 // pred_check_branch
          %277 = sbr.rel (%p275) target = $region28
        $region27: #{tpu_custom_call.1} parent=11 // pred_region
          %279 = vsyncadd [#allocation6], 0
          %s281 = sshll.u32 %s4, 4
          %s282 = int_to_ptr.hbm [resolvable:$true] %s281
          %s283 = sshll.u32 [#allocation5], 4
          %s284 = int_to_ptr.vmem [resolvable:$true] %s283
          %286 = dma.hbm_to_vmem [thread:$0]  %s282, 512, %s284, [#allocation6]
        $region28: #{tpu_custom_call.1} parent=11 // pred_fallthru
          _
        // Predicated region
        $region29: #{tpu_custom_call.1} parent=11 // pred_check
          %p287 = pneg %p151
        $region30: #{tpu_custom_call.1} parent=11 // pred_check_branch
          %289 = sbr.rel (%p287) target = $region32
        $region31: #{tpu_custom_call.1} parent=11 // pred_region
          _
        $region32: #{tpu_custom_call.1} parent=11 // pred_fallthru
          _
        // Predicated region
        $region33: #{tpu_custom_call.1} parent=11 // pred_check
          %p290 = pneg %p172
        $region34: #{tpu_custom_call.1} parent=11 // pred_check_branch
          %292 = sbr.rel (%p290) target = $region36
        $region35: #{tpu_custom_call.1} parent=11 // pred_region
          _
        $region36: #{tpu_custom_call.1} parent=11 // pred_fallthru
          _
        // Predicated region
        $region37: #{tpu_custom_call.1} parent=11 // pred_check
          %p293 = pneg %p193
        $region38: #{tpu_custom_call.1} parent=11 // pred_check_branch
          %295 = sbr.rel (%p293) target = $region40
        $region39: #{tpu_custom_call.1} parent=11 // pred_region
          _
        $region40: #{tpu_custom_call.1} parent=11 // pred_fallthru
          _
        // Predicated region
        $region41: #{tpu_custom_call.1} parent=11 // pred_check
          %p296 = pneg %p214
        $region42: #{tpu_custom_call.1} parent=11 // pred_check_branch
          %298 = sbr.rel (%p296) target = $region44
        $region43: #{tpu_custom_call.1} parent=11 // pred_region
          _
        $region44: #{tpu_custom_call.1} parent=11 // pred_fallthru
          _
      $region12: #{tpu_custom_call.1} parent=5 // pred_fallthru
        _
      %p299 = scmp.lt.s32.totalorder %s20, 4
      // Predicated region
      $region45: #{tpu_custom_call.1} parent=5 // pred_check
        %p300 = pneg %p299
      $region46: #{tpu_custom_call.1} parent=5 // pred_check_branch
        %302 = sbr.rel (%p300) target = $region48
      $region47: #{tpu_custom_call.1} parent=5 // pred_region
        // Predicated region
        $region49: #{tpu_custom_call.1} parent=47 // pred_check
          %p303 = pneg %p40
        $region50: #{tpu_custom_call.1} parent=47 // pred_check_branch
          %305 = sbr.rel (%p303) target = $region52
        $region51: #{tpu_custom_call.1} parent=47 // pred_region
          %p306 = scmp.lt.s32.totalorder %s20, 3
          %s307 = scalar_select %p306, %s20, 3
          %s308 = smul.addr %s307, 40
          %s309 = smul.addr %s308, 4
          %s310 = scalar_lea.vmem %s0, %s309
        $region52: #{tpu_custom_call.1} parent=47 // pred_fallthru
          _
      $region48: #{tpu_custom_call.1} parent=5 // pred_fallthru
        _
      %p311 = scmp.le.s32.totalorder 1, %s20
      %p312 = scmp.lt.s32.totalorder %s20, 5
      %p313 = pnand %p311, %p312
      %p314 = pneg %p313
      // Predicated region
      $region53: #{tpu_custom_call.1} parent=5 // pred_check
        _
      $region54: #{tpu_custom_call.1} parent=5 // pred_check_branch
        %316 = sbr.rel (%p313) target = $region56
      $region55: #{tpu_custom_call.1} parent=5 // pred_region
        %s317 = ssub.s32 %s20, 1
        // Predicated region
        $region57: #{tpu_custom_call.1} parent=55 // pred_check
          %p318 = pneg %p67
        $region58: #{tpu_custom_call.1} parent=55 // pred_check_branch
          %320 = sbr.rel (%p318) target = $region60
        $region59: #{tpu_custom_call.1} parent=55 // pred_region
          %322 = dma.done [#allocation3], 128
        $region60: #{tpu_custom_call.1} parent=55 // pred_fallthru
          _
        // Predicated region
        $region61: #{tpu_custom_call.1} parent=55 // pred_check
          %p323 = pneg %p130
        $region62: #{tpu_custom_call.1} parent=55 // pred_check_branch
          %325 = sbr.rel (%p323) target = $region64
        $region63: #{tpu_custom_call.1} parent=55 // pred_region
          %327 = dma.done [#allocation6], 512
        $region64: #{tpu_custom_call.1} parent=55 // pred_fallthru
          _
        %p328 = scmp.lt.s32.totalorder %s25, 3
        %s329 = scalar_select %p328, %s25, 3
        %s330 = smul.addr %s329, 40
        %s331 = smul.addr %s330, 4
        %s332 = scalar_lea.vmem %s0, %s331
        %p333 = pneg %p46
        %p334 = pneg %p43
        %p335 = pneg %p67
        %p336 = pneg %p64
        %p337 = pneg %p88
        %p338 = pneg %p85
        %p339 = pneg %p109
        %p340 = pneg %p106
        %p341 = pneg %p130
        %p342 = pneg %p127
        %p343 = pneg %p151
        %p344 = pneg %p148
        %p345 = pneg %p172
        %p346 = pneg %p169
        %p347 = pneg %p193
        %p348 = pneg %p190
        %p349 = pneg %p214
        %p350 = pneg %p211
        %p351 = pneg %p240
        %p352 = pneg %p237
        %s353 = sand.u32 %s227, 1
        %s354 = scalar_lea.sflag [#allocation4], %s353
        %s355 = sand.u32 %s227, 1
        %s356 = smul.addr %s355, 32
        %s357 = scalar_lea.vmem [#allocation7], %s356
        %p358 = scmp.lt.s32.totalorder %s25, 3
        %s359 = scalar_select %p358, %s25, 3
        %s360 = smul.addr %s359, 40
        %s361 = smul.addr %s360, 4
        %s362 = scalar_lea.vmem %s0, %s361
        %v364 = vld [vmem:[%s362] sm:$0xff]
        %v365 = vld [vmem:[%s362 + $0x8] sm:$0xff]
        %v366 = vld [vmem:[%s362 + $0x10] sm:$0xff]
        %v367 = vld [vmem:[%s362 + $0x18] sm:$0xff]
        %v368 = vld [vmem:[%s362 + $0x20] sm:$0xff]
        %v369 = vld [vmem:[%s362 + $0x28] sm:$0xff]
        %v370 = vld [vmem:[%s362 + $0x30] sm:$0xff]
        %v371 = vld [vmem:[%s362 + $0x38] sm:$0xff]
        %v372 = vld [vmem:[%s362 + $0x40] sm:$0xff]
        %v373 = vld [vmem:[%s362 + $0x48] sm:$0xff]
        %v374 = vld [vmem:[%s362 + $0x50] sm:$0xff]
        %v375 = vld [vmem:[%s362 + $0x58] sm:$0xff]
        %v376 = vld [vmem:[%s362 + $0x60] sm:$0xff]
        %v377 = vld [vmem:[%s362 + $0x68] sm:$0xff]
        %v378 = vld [vmem:[%s362 + $0x70] sm:$0xff]
        %v379 = vld [vmem:[%s362 + $0x78] sm:$0xff]
        %v380 = vld [vmem:[%s362 + $0x80] sm:$0xff]
        %v381 = vld [vmem:[%s362 + $0x88] sm:$0xff]
        %v382 = vld [vmem:[%s362 + $0x90] sm:$0xff]
        %v383 = vld [vmem:[%s362 + $0x98] sm:$0xff]
        %v384 = vld [vmem:[#allocation2] sm:$0xf]
        %v385 = vld [vmem:[#allocation2 + $0x4] sm:$0xf]
        %v386 = vld [vmem:[%s2] sm:$0xff]
        %v387 = vld [vmem:[%s2 + $0x8] sm:$0xff]
        %389 = vset.pattern.permute.xlu0 0
        %390 = vperm.xlu0 %389, %v386
        %v391 = vpop.permute.xlu0 %390
        %394 = vset.pattern.permute.xlu0 0
        %395 = vperm.xlu0 %394, %v387
        %v396 = vpop.permute.xlu0 %395
        %v400 = vunpack.c.l.b16 %v384
        %v401 = vunpack.c.l.b16 %v385
        %v402 = vpack.c.b16 %v401, %v400
        %v423 = vunpack.c.l.b16 %v364
        %v424 = vunpack.c.h.b16 %v364
        %v425 = vunpack.c.l.b16 %v365
        %v426 = vunpack.c.h.b16 %v365
        %v427 = vunpack.c.l.b16 %v366
        %v428 = vunpack.c.h.b16 %v366
        %v429 = vunpack.c.l.b16 %v367
        %v430 = vunpack.c.h.b16 %v367
        %v431 = vunpack.c.l.b16 %v368
        %v432 = vunpack.c.h.b16 %v368
        %v433 = vunpack.c.l.b16 %v369
        %v434 = vunpack.c.h.b16 %v369
        %v435 = vunpack.c.l.b16 %v370
        %v436 = vunpack.c.h.b16 %v370
        %v437 = vunpack.c.l.b16 %v371
        %v438 = vunpack.c.h.b16 %v371
        %v439 = vunpack.c.l.b16 %v372
        %v440 = vunpack.c.h.b16 %v372
        %v441 = vunpack.c.l.b16 %v373
        %v442 = vunpack.c.h.b16 %v373
        %v443 = vunpack.c.l.b16 %v374
        %v444 = vunpack.c.h.b16 %v374
        %v445 = vunpack.c.l.b16 %v375
        %v446 = vunpack.c.h.b16 %v375
        %v447 = vunpack.c.l.b16 %v376
        %v448 = vunpack.c.h.b16 %v376
        %v449 = vunpack.c.l.b16 %v377
        %v450 = vunpack.c.h.b16 %v377
        %v451 = vunpack.c.l.b16 %v378
        %v452 = vunpack.c.h.b16 %v378
        %v453 = vunpack.c.l.b16 %v379
        %v454 = vunpack.c.h.b16 %v379
        %v455 = vunpack.c.l.b16 %v380
        %v456 = vunpack.c.h.b16 %v380
        %v457 = vunpack.c.l.b16 %v381
        %v458 = vunpack.c.h.b16 %v381
        %v459 = vunpack.c.l.b16 %v382
        %v460 = vunpack.c.h.b16 %v382
        %v461 = vunpack.c.l.b16 %v383
        %v462 = vunpack.c.h.b16 %v383
        %v463 = vpack.c.b16 %v427, %v423
        %v464 = vpack.c.b16 %v428, %v424
        %v465 = vpack.c.b16 %v429, %v425
        %v466 = vpack.c.b16 %v430, %v426
        %v467 = vpack.c.b16 %v435, %v431
        %v468 = vpack.c.b16 %v436, %v432
        %v469 = vpack.c.b16 %v437, %v433
        %v470 = vpack.c.b16 %v438, %v434
        %v471 = vpack.c.b16 %v443, %v439
        %v472 = vpack.c.b16 %v444, %v440
        %v473 = vpack.c.b16 %v445, %v441
        %v474 = vpack.c.b16 %v446, %v442
        %v475 = vpack.c.b16 %v451, %v447
        %v476 = vpack.c.b16 %v452, %v448
        %v477 = vpack.c.b16 %v453, %v449
        %v478 = vpack.c.b16 %v454, %v450
        %v479 = vpack.c.b16 %v459, %v455
        %v480 = vpack.c.b16 %v460, %v456
        %v481 = vpack.c.b16 %v461, %v457
        %v482 = vpack.c.b16 %v462, %v458
        %vm503 = vcmask 654336
        %v505 = vsel %vm503, %v402, 0
        %507 = vmatpush.bf16.msra.mxu0 0
        %508 = vmatpush.bf16.msra.mxu0 0
        %509 = vmatpush.bf16.msra.mxu0 0
        %510 = vmatpush.bf16.msra.mxu0 %v479
        %511 = vmatpush.bf16.msra.mxu0 %v475
        %512 = vmatpush.bf16.msra.mxu0 %v471
        %513 = vmatpush.bf16.msra.mxu0 %v467
        %514 = vmatpush.bf16.msra.mxu0 %v463
        %515 = vmatmul.bf16.gmra.mxu0 %v505
        %v516 = vpop.f32.mrf.mxu0
        %v517 = vadd.f32 %v391, %v516
        %v518 = vpop.f32.mrf.mxu0
        %v519 = vadd.f32 %v396, %v518
        %520 = vdwg.mxu0
        %521 = vmatpush.bf16.msra.mxu0 0
        %522 = vmatpush.bf16.msra.mxu0 0
        %523 = vmatpush.bf16.msra.mxu0 0
        %524 = vmatpush.bf16.msra.mxu0 %v480
        %525 = vmatpush.bf16.msra.mxu0 %v476
        %526 = vmatpush.bf16.msra.mxu0 %v472
        %527 = vmatpush.bf16.msra.mxu0 %v468
        %528 = vmatpush.bf16.msra.mxu0 %v464
        %529 = vmatmul.bf16.gmra.mxu0 %v505
        %v530 = vpop.f32.mrf.mxu0
        %v531 = vadd.f32 %v391, %v530
        %v532 = vpop.f32.mrf.mxu0
        %v533 = vadd.f32 %v396, %v532
        %534 = vdwg.mxu0
        %535 = vmatpush.bf16.msra.mxu0 0
        %536 = vmatpush.bf16.msra.mxu0 0
        %537 = vmatpush.bf16.msra.mxu0 0
        %538 = vmatpush.bf16.msra.mxu0 %v481
        %539 = vmatpush.bf16.msra.mxu0 %v477
        %540 = vmatpush.bf16.msra.mxu0 %v473
        %541 = vmatpush.bf16.msra.mxu0 %v469
        %542 = vmatpush.bf16.msra.mxu0 %v465
        %543 = vmatmul.bf16.gmra.mxu0 %v505
        %v544 = vpop.f32.mrf.mxu0
        %v545 = vadd.f32 %v391, %v544
        %v546 = vpop.f32.mrf.mxu0
        %v547 = vadd.f32 %v396, %v546
        %548 = vdwg.mxu0
        %549 = vmatpush.bf16.msra.mxu0 0
        %550 = vmatpush.bf16.msra.mxu0 0
        %551 = vmatpush.bf16.msra.mxu0 0
        %552 = vmatpush.bf16.msra.mxu0 %v482
        %553 = vmatpush.bf16.msra.mxu0 %v478
        %554 = vmatpush.bf16.msra.mxu0 %v474
        %555 = vmatpush.bf16.msra.mxu0 %v470
        %556 = vmatpush.bf16.msra.mxu0 %v466
        %557 = vmatmul.bf16.gmra.mxu0 %v505
        %v558 = vpop.f32.mrf.mxu0
        %v559 = vadd.f32 %v391, %v558
        %v560 = vpop.f32.mrf.mxu0
        %v561 = vadd.f32 %v396, %v560
        %562 = vdwg.mxu0
        %v563 = vmax.f32 %v517, 0.0
        %v564 = vmax.f32 %v531, 0.0
        %v565 = vmax.f32 %v545, 0.0
        %v566 = vmax.f32 %v559, 0.0
        %v567 = vmax.f32 %v519, 0.0
        %v568 = vmax.f32 %v533, 0.0
        %v569 = vmax.f32 %v547, 0.0
        %v570 = vmax.f32 %v561, 0.0
        %v571 = vadd.f32 %v563, %v567
        %v572 = vadd.f32 %v564, %v568
        %v573 = vadd.f32 %v565, %v569
        %v574 = vadd.f32 %v566, %v570
        %v575 = vld [vmem:[%s3] sm:$0xff]
        %v576 = vld [vmem:[%s3 + $0x8] sm:$0xff]
        %v577 = vld [vmem:[%s3 + $0x10] sm:$0xff]
        %v578 = vld [vmem:[%s3 + $0x18] sm:$0xff]
        %v579 = vld [vmem:[%s3 + $0x20] sm:$0xff]
        %v580 = vld [vmem:[%s3 + $0x28] sm:$0xff]
        %v581 = vld [vmem:[%s3 + $0x30] sm:$0xff]
        %v582 = vld [vmem:[%s3 + $0x38] sm:$0xff]
        %v583 = vld [vmem:[%s3 + $0x40] sm:$0xff]
        %v584 = vld [vmem:[%s3 + $0x48] sm:$0xff]
        %v585 = vld [vmem:[%s3 + $0x50] sm:$0xff]
        %v586 = vld [vmem:[%s3 + $0x58] sm:$0xff]
        %v587 = vld [vmem:[%s3 + $0x60] sm:$0xff]
        %v588 = vld [vmem:[%s3 + $0x68] sm:$0xff]
        %v589 = vld [vmem:[%s3 + $0x70] sm:$0xff]
        %v590 = vld [vmem:[%s3 + $0x78] sm:$0xff]
        %v591 = vld [vmem:[%s3 + $0x80] sm:$0xff]
        %v592 = vld [vmem:[%s3 + $0x88] sm:$0xff]
        %v593 = vld [vmem:[%s3 + $0x90] sm:$0xff]
        %v594 = vld [vmem:[%s3 + $0x98] sm:$0xff]
        %v595 = vld [vmem:[%s3 + $0xa0] sm:$0xff]
        %v596 = vld [vmem:[%s3 + $0xa8] sm:$0xff]
        %v597 = vld [vmem:[%s3 + $0xb0] sm:$0xff]
        %v598 = vld [vmem:[%s3 + $0xb8] sm:$0xff]
        %v599 = vld [vmem:[%s3 + $0xc0] sm:$0xff]
        %v600 = vld [vmem:[%s3 + $0xc8] sm:$0xff]
        %v601 = vld [vmem:[%s3 + $0xd0] sm:$0xff]
        %v602 = vld [vmem:[%s3 + $0xd8] sm:$0xff]
        %v603 = vld [vmem:[%s3 + $0xe0] sm:$0xff]
        %v604 = vld [vmem:[%s3 + $0xe8] sm:$0xff]
        %v605 = vld [vmem:[%s3 + $0xf0] sm:$0xff]
        %v606 = vld [vmem:[%s3 + $0xf8] sm:$0xff]
        %v607 = vld [vmem:[%s3 + $0x100] sm:$0xff]
        %v608 = vld [vmem:[%s3 + $0x108] sm:$0xff]
        %v609 = vld [vmem:[%s3 + $0x110] sm:$0xff]
        %v610 = vld [vmem:[%s3 + $0x118] sm:$0xff]
        %v611 = vld [vmem:[%s3 + $0x120] sm:$0xff]
        %v612 = vld [vmem:[%s3 + $0x128] sm:$0xff]
        %v613 = vld [vmem:[%s3 + $0x130] sm:$0xff]
        %v614 = vld [vmem:[%s3 + $0x138] sm:$0xff]
        %v615 = vld [vmem:[%s3 + $0x140] sm:$0xff]
        %v616 = vld [vmem:[%s3 + $0x148] sm:$0xff]
        %v617 = vld [vmem:[%s3 + $0x150] sm:$0xff]
        %v618 = vld [vmem:[%s3 + $0x158] sm:$0xff]
        %v619 = vld [vmem:[%s3 + $0x160] sm:$0xff]
        %v620 = vld [vmem:[%s3 + $0x168] sm:$0xff]
        %v621 = vld [vmem:[%s3 + $0x170] sm:$0xff]
        %v622 = vld [vmem:[%s3 + $0x178] sm:$0xff]
        %v623 = vld [vmem:[%s3 + $0x180] sm:$0xff]
        %v624 = vld [vmem:[%s3 + $0x188] sm:$0xff]
        %v625 = vld [vmem:[%s3 + $0x190] sm:$0xff]
        %v626 = vld [vmem:[%s3 + $0x198] sm:$0xff]
        %v627 = vld [vmem:[%s3 + $0x1a0] sm:$0xff]
        %v628 = vld [vmem:[%s3 + $0x1a8] sm:$0xff]
        %v629 = vld [vmem:[%s3 + $0x1b0] sm:$0xff]
        %v630 = vld [vmem:[%s3 + $0x1b8] sm:$0xff]
        %v631 = vld [vmem:[%s3 + $0x1c0] sm:$0xff]
        %v632 = vld [vmem:[%s3 + $0x1c8] sm:$0xff]
        %v633 = vld [vmem:[%s3 + $0x1d0] sm:$0xff]
        %v634 = vld [vmem:[%s3 + $0x1d8] sm:$0xff]
        %v635 = vld [vmem:[%s3 + $0x1e0] sm:$0xff]
        %v636 = vld [vmem:[%s3 + $0x1e8] sm:$0xff]
        %v637 = vld [vmem:[%s3 + $0x1f0] sm:$0xff]
        %v638 = vld [vmem:[%s3 + $0x1f8] sm:$0xff]
        %639 = vmatpush.msra.mxu0 %v590
        %640 = vmatpush.msra.mxu0 %v589
        %641 = vmatpush.msra.mxu0 %v588
        %642 = vmatpush.msra.mxu0 %v587
        %643 = vmatpush.msra.mxu0 %v586
        %644 = vmatpush.msra.mxu0 %v585
        %645 = vmatpush.msra.mxu0 %v584
        %646 = vmatpush.msra.mxu0 %v583
        %647 = vmatpush.msra.mxu0 %v582
        %648 = vmatpush.msra.mxu0 %v581
        %649 = vmatpush.msra.mxu0 %v580
        %650 = vmatpush.msra.mxu0 %v579
        %651 = vmatpush.msra.mxu0 %v578
        %652 = vmatpush.msra.mxu0 %v577
        %653 = vmatpush.msra.mxu0 %v576
        %654 = vmatpush.msra.mxu0 %v575
        %655 = vmatmul.f32.gmra.mxu0 %v571
        %v656 = vpop.f32.mrf.mxu0
        %v657 = vadd.f32 0.0, %v656
        %658 = vdwg.mxu0
        %659 = vmatpush.msra.mxu0 %v606
        %660 = vmatpush.msra.mxu0 %v605
        %661 = vmatpush.msra.mxu0 %v604
        %662 = vmatpush.msra.mxu0 %v603
        %663 = vmatpush.msra.mxu0 %v602
        %664 = vmatpush.msra.mxu0 %v601
        %665 = vmatpush.msra.mxu0 %v600
        %666 = vmatpush.msra.mxu0 %v599
        %667 = vmatpush.msra.mxu0 %v598
        %668 = vmatpush.msra.mxu0 %v597
        %669 = vmatpush.msra.mxu0 %v596
        %670 = vmatpush.msra.mxu0 %v595
        %671 = vmatpush.msra.mxu0 %v594
        %672 = vmatpush.msra.mxu0 %v593
        %673 = vmatpush.msra.mxu0 %v592
        %674 = vmatpush.msra.mxu0 %v591
        %675 = vmatmul.f32.gmra.mxu0 %v572
        %v676 = vpop.f32.mrf.mxu0
        %v677 = vadd.f32 %v657, %v676
        %678 = vdwg.mxu0
        %679 = vmatpush.msra.mxu0 %v622
        %680 = vmatpush.msra.mxu0 %v621
        %681 = vmatpush.msra.mxu0 %v620
        %682 = vmatpush.msra.mxu0 %v619
        %683 = vmatpush.msra.mxu0 %v618
        %684 = vmatpush.msra.mxu0 %v617
        %685 = vmatpush.msra.mxu0 %v616
        %686 = vmatpush.msra.mxu0 %v615
        %687 = vmatpush.msra.mxu0 %v614
        %688 = vmatpush.msra.mxu0 %v613
        %689 = vmatpush.msra.mxu0 %v612
        %690 = vmatpush.msra.mxu0 %v611
        %691 = vmatpush.msra.mxu0 %v610
        %692 = vmatpush.msra.mxu0 %v609
        %693 = vmatpush.msra.mxu0 %v608
        %694 = vmatpush.msra.mxu0 %v607
        %695 = vmatmul.f32.gmra.mxu0 %v573
        %v696 = vpop.f32.mrf.mxu0
        %v697 = vadd.f32 %v677, %v696
        %698 = vdwg.mxu0
        %699 = vmatpush.msra.mxu0 %v638
        %700 = vmatpush.msra.mxu0 %v637
        %701 = vmatpush.msra.mxu0 %v636
        %702 = vmatpush.msra.mxu0 %v635
        %703 = vmatpush.msra.mxu0 %v634
        %704 = vmatpush.msra.mxu0 %v633
        %705 = vmatpush.msra.mxu0 %v632
        %706 = vmatpush.msra.mxu0 %v631
        %707 = vmatpush.msra.mxu0 %v630
        %708 = vmatpush.msra.mxu0 %v629
        %709 = vmatpush.msra.mxu0 %v628
        %710 = vmatpush.msra.mxu0 %v627
        %711 = vmatpush.msra.mxu0 %v626
        %712 = vmatpush.msra.mxu0 %v625
        %713 = vmatpush.msra.mxu0 %v624
        %714 = vmatpush.msra.mxu0 %v623
        %715 = vmatmul.f32.gmra.mxu0 %v574
        %v716 = vpop.f32.mrf.mxu0
        %v717 = vadd.f32 %v697, %v716
        %718 = vdwg.mxu0
        %v719 = vld [vmem:[%s5] sm:$0xff]
        %v720 = vld [vmem:[%s5 + $0x8] sm:$0xff]
        %v721 = vld [vmem:[%s5 + $0x10] sm:$0xff]
        %v722 = vld [vmem:[%s5 + $0x18] sm:$0xff]
        %v723 = vld [vmem:[%s6] sm:$0xff]
        %v724 = vld [vmem:[%s6 + $0x8] sm:$0xff]
        %v725 = vld [vmem:[%s6 + $0x10] sm:$0xff]
        %v726 = vld [vmem:[%s6 + $0x18] sm:$0xff]
        %728 = vset.pattern.permute.xlu0 0
        %729 = vperm.xlu0 %728, %v723
        %v730 = vpop.permute.xlu0 %729
        %733 = vset.pattern.permute.xlu0 0
        %734 = vperm.xlu0 %733, %v724
        %v735 = vpop.permute.xlu0 %734
        %738 = vset.pattern.permute.xlu0 0
        %739 = vperm.xlu0 %738, %v725
        %v740 = vpop.permute.xlu0 %739
        %743 = vset.pattern.permute.xlu0 0
        %744 = vperm.xlu0 %743, %v726
        %v745 = vpop.permute.xlu0 %744
        %vm747 = vcmask 64512
        %v749 = vsel %vm747, %v719, 0
        %v752 = vsel %vm747, %v720, 0
        %v755 = vsel %vm747, %v721, 0
        %v758 = vsel %vm747, %v722, 0
        %760 = vmatpush.msra.mxu0 0.0
        %761 = vmatpush.msra.mxu0 0.0
        %762 = vmatpush.msra.mxu0 0.0
        %763 = vmatpush.msra.mxu0 0.0
        %764 = vmatpush.msra.mxu0 0.0
        %765 = vmatpush.msra.mxu0 0.0
        %766 = vmatpush.msra.mxu0 0.0
        %767 = vmatpush.msra.mxu0 0.0
        %768 = vmatpush.msra.mxu0 0.0
        %769 = vmatpush.msra.mxu0 0.0
        %770 = vmatpush.msra.mxu0 0.0
        %771 = vmatpush.msra.mxu0 0.0
        %772 = vmatpush.msra.mxu0 0.0
        %773 = vmatpush.msra.mxu0 0.0
        %774 = vmatpush.msra.mxu0 0.0
        %775 = vmatpush.msra.mxu0 %v717
        %776 = vmatmul.f32.gmra.mxu0 %v749
        %v777 = vpop.f32.mrf.mxu0
        %v778 = vadd.f32 %v730, %v777
        %779 = vmatmul.f32.gmra.mxu0 %v752
        %v780 = vpop.f32.mrf.mxu0
        %v781 = vadd.f32 %v735, %v780
        %782 = vmatmul.f32.gmra.mxu0 %v755
        %v783 = vpop.f32.mrf.mxu0
        %v784 = vadd.f32 %v740, %v783
        %785 = vmatmul.f32.gmra.mxu0 %v758
        %v786 = vpop.f32.mrf.mxu0
        %v787 = vadd.f32 %v745, %v786
        %788 = vdwg.mxu0
        %v789 = vmax.f32 %v778, 0.0
        %v790 = vmax.f32 %v781, 0.0
        %v791 = vmax.f32 %v784, 0.0
        %v792 = vmax.f32 %v787, 0.0
        %v793 = vld [vmem:[%s7] sm:$0xff]
        %v794 = vld [vmem:[%s7 + $0x8] sm:$0xff]
        %v795 = vld [vmem:[%s8] sm:$0xff]
        %v796 = vld [vmem:[%s8 + $0x8] sm:$0xff]
        %798 = vset.pattern.permute.xlu0 0
        %799 = vperm.xlu0 %798, %v795
        %v800 = vpop.permute.xlu0 %799
        %803 = vset.pattern.permute.xlu0 0
        %804 = vperm.xlu0 %803, %v796
        %v805 = vpop.permute.xlu0 %804
        %vm807 = vcmask 261120
        %v809 = vsel %vm807, %v793, 0
        %v812 = vsel %vm807, %v794, 0
        %814 = vmatpush.msra.mxu0 0.0
        %815 = vmatpush.msra.mxu0 0.0
        %816 = vmatpush.msra.mxu0 0.0
        %817 = vmatpush.msra.mxu0 0.0
        %818 = vmatpush.msra.mxu0 0.0
        %819 = vmatpush.msra.mxu0 0.0
        %820 = vmatpush.msra.mxu0 0.0
        %821 = vmatpush.msra.mxu0 0.0
        %822 = vmatpush.msra.mxu0 0.0
        %823 = vmatpush.msra.mxu0 0.0
        %824 = vmatpush.msra.mxu0 0.0
        %825 = vmatpush.msra.mxu0 0.0
        %826 = vmatpush.msra.mxu0 %v792
        %827 = vmatpush.msra.mxu0 %v791
        %828 = vmatpush.msra.mxu0 %v790
        %829 = vmatpush.msra.mxu0 %v789
        %830 = vmatmul.f32.gmra.mxu0 %v809
        %v831 = vpop.f32.mrf.mxu0
        %v832 = vadd.f32 %v800, %v831
        %833 = vmatmul.f32.gmra.mxu0 %v812
        %v834 = vpop.f32.mrf.mxu0
        %v835 = vadd.f32 %v805, %v834
        %836 = vdwg.mxu0
        %v837 = vmax.f32 %v832, %v835
        %v838 = vsub.f32 %v832, %v837
        %v839 = vmul.f32 %v838, 1.442695
        %v840 = vpow.pop %v839
        %v841 = vsub.f32 %v835, %v837
        %v842 = vmul.f32 %v841, 1.442695
        %v843 = vpow.pop %v842
        %v844 = vadd.f32 %v840, %v843
        %v845 = vrcp.pop %v844
        %v846 = vmul.f32 %v840, %v845
        %v847 = vmul.f32 %v843, %v845
        %v848 = vld [vmem:[#allocation5] sm:$0xff]
        %v849 = vld [vmem:[#allocation5 + $0x8] sm:$0xff]
        %v850 = vld [vmem:[#allocation5 + $0x10] sm:$0xff]
        %v851 = vld [vmem:[#allocation5 + $0x18] sm:$0xff]
        %v853 = vsel %vm747, %v846, 0
        %855 = vmatpush.msra.mxu0 0.0
        %856 = vmatpush.msra.mxu0 0.0
        %857 = vmatpush.msra.mxu0 0.0
        %858 = vmatpush.msra.mxu0 0.0
        %859 = vmatpush.msra.mxu0 0.0
        %860 = vmatpush.msra.mxu0 0.0
        %861 = vmatpush.msra.mxu0 0.0
        %862 = vmatpush.msra.mxu0 0.0
        %863 = vmatpush.msra.mxu0 0.0
        %864 = vmatpush.msra.mxu0 0.0
        %865 = vmatpush.msra.mxu0 0.0
        %866 = vmatpush.msra.mxu0 0.0
        %867 = vmatpush.msra.mxu0 0.0
        %868 = vmatpush.msra.mxu0 0.0
        %869 = vmatpush.msra.mxu0 0.0
        %870 = vmatpush.msra.mxu0 %v848
        %871 = vmatmul.f32.gmra.mxu0 %v853
        %v872 = vpop.f32.mrf.mxu0
        %v873 = vadd.f32 0.0, %v872
        %874 = vdwg.mxu0
        %875 = vmatpush.msra.mxu0 0.0
        %876 = vmatpush.msra.mxu0 0.0
        %877 = vmatpush.msra.mxu0 0.0
        %878 = vmatpush.msra.mxu0 0.0
        %879 = vmatpush.msra.mxu0 0.0
        %880 = vmatpush.msra.mxu0 0.0
        %881 = vmatpush.msra.mxu0 0.0
        %882 = vmatpush.msra.mxu0 0.0
        %883 = vmatpush.msra.mxu0 0.0
        %884 = vmatpush.msra.mxu0 0.0
        %885 = vmatpush.msra.mxu0 0.0
        %886 = vmatpush.msra.mxu0 0.0
        %887 = vmatpush.msra.mxu0 0.0
        %888 = vmatpush.msra.mxu0 0.0
        %889 = vmatpush.msra.mxu0 0.0
        %890 = vmatpush.msra.mxu0 %v849
        %891 = vmatmul.f32.gmra.mxu0 %v853
        %v892 = vpop.f32.mrf.mxu0
        %v893 = vadd.f32 0.0, %v892
        %894 = vdwg.mxu0
        %895 = vmatpush.msra.mxu0 0.0
        %896 = vmatpush.msra.mxu0 0.0
        %897 = vmatpush.msra.mxu0 0.0
        %898 = vmatpush.msra.mxu0 0.0
        %899 = vmatpush.msra.mxu0 0.0
        %900 = vmatpush.msra.mxu0 0.0
        %901 = vmatpush.msra.mxu0 0.0
        %902 = vmatpush.msra.mxu0 0.0
        %903 = vmatpush.msra.mxu0 0.0
        %904 = vmatpush.msra.mxu0 0.0
        %905 = vmatpush.msra.mxu0 0.0
        %906 = vmatpush.msra.mxu0 0.0
        %907 = vmatpush.msra.mxu0 0.0
        %908 = vmatpush.msra.mxu0 0.0
        %909 = vmatpush.msra.mxu0 0.0
        %910 = vmatpush.msra.mxu0 %v850
        %911 = vmatmul.f32.gmra.mxu0 %v853
        %v912 = vpop.f32.mrf.mxu0
        %v913 = vadd.f32 0.0, %v912
        %914 = vdwg.mxu0
        %915 = vmatpush.msra.mxu0 0.0
        %916 = vmatpush.msra.mxu0 0.0
        %917 = vmatpush.msra.mxu0 0.0
        %918 = vmatpush.msra.mxu0 0.0
        %919 = vmatpush.msra.mxu0 0.0
        %920 = vmatpush.msra.mxu0 0.0
        %921 = vmatpush.msra.mxu0 0.0
        %922 = vmatpush.msra.mxu0 0.0
        %923 = vmatpush.msra.mxu0 0.0
        %924 = vmatpush.msra.mxu0 0.0
        %925 = vmatpush.msra.mxu0 0.0
        %926 = vmatpush.msra.mxu0 0.0
        %927 = vmatpush.msra.mxu0 0.0
        %928 = vmatpush.msra.mxu0 0.0
        %929 = vmatpush.msra.mxu0 0.0
        %930 = vmatpush.msra.mxu0 %v851
        %931 = vmatmul.f32.gmra.mxu0 %v853
        %v932 = vpop.f32.mrf.mxu0
        %v933 = vadd.f32 0.0, %v932
        %934 = vdwg.mxu0
        %v935 = vmul.f32 %v873, %v563
        %v936 = vmul.f32 %v893, %v564
        %v937 = vmul.f32 %v913, %v565
        %v938 = vmul.f32 %v933, %v566
        %v940 = vsel %vm747, %v847, 0
        %942 = vmatpush.msra.mxu0 0.0
        %943 = vmatpush.msra.mxu0 0.0
        %944 = vmatpush.msra.mxu0 0.0
        %945 = vmatpush.msra.mxu0 0.0
        %946 = vmatpush.msra.mxu0 0.0
        %947 = vmatpush.msra.mxu0 0.0
        %948 = vmatpush.msra.mxu0 0.0
        %949 = vmatpush.msra.mxu0 0.0
        %950 = vmatpush.msra.mxu0 0.0
        %951 = vmatpush.msra.mxu0 0.0
        %952 = vmatpush.msra.mxu0 0.0
        %953 = vmatpush.msra.mxu0 0.0
        %954 = vmatpush.msra.mxu0 0.0
        %955 = vmatpush.msra.mxu0 0.0
        %956 = vmatpush.msra.mxu0 0.0
        %957 = vmatpush.msra.mxu0 %v848
        %958 = vmatmul.f32.gmra.mxu0 %v940
        %v959 = vpop.f32.mrf.mxu0
        %v960 = vadd.f32 0.0, %v959
        %961 = vdwg.mxu0
        %962 = vmatpush.msra.mxu0 0.0
        %963 = vmatpush.msra.mxu0 0.0
        %964 = vmatpush.msra.mxu0 0.0
        %965 = vmatpush.msra.mxu0 0.0
        %966 = vmatpush.msra.mxu0 0.0
        %967 = vmatpush.msra.mxu0 0.0
        %968 = vmatpush.msra.mxu0 0.0
        %969 = vmatpush.msra.mxu0 0.0
        %970 = vmatpush.msra.mxu0 0.0
        %971 = vmatpush.msra.mxu0 0.0
        %972 = vmatpush.msra.mxu0 0.0
        %973 = vmatpush.msra.mxu0 0.0
        %974 = vmatpush.msra.mxu0 0.0
        %975 = vmatpush.msra.mxu0 0.0
        %976 = vmatpush.msra.mxu0 0.0
        %977 = vmatpush.msra.mxu0 %v849
        %978 = vmatmul.f32.gmra.mxu0 %v940
        %v979 = vpop.f32.mrf.mxu0
        %v980 = vadd.f32 0.0, %v979
        %981 = vdwg.mxu0
        %982 = vmatpush.msra.mxu0 0.0
        %983 = vmatpush.msra.mxu0 0.0
        %984 = vmatpush.msra.mxu0 0.0
        %985 = vmatpush.msra.mxu0 0.0
        %986 = vmatpush.msra.mxu0 0.0
        %987 = vmatpush.msra.mxu0 0.0
        %988 = vmatpush.msra.mxu0 0.0
        %989 = vmatpush.msra.mxu0 0.0
        %990 = vmatpush.msra.mxu0 0.0
        %991 = vmatpush.msra.mxu0 0.0
        %992 = vmatpush.msra.mxu0 0.0
        %993 = vmatpush.msra.mxu0 0.0
        %994 = vmatpush.msra.mxu0 0.0
        %995 = vmatpush.msra.mxu0 0.0
        %996 = vmatpush.msra.mxu0 0.0
        %997 = vmatpush.msra.mxu0 %v850
        %998 = vmatmul.f32.gmra.mxu0 %v940
        %v999 = vpop.f32.mrf.mxu0
        %v1000 = vadd.f32 0.0, %v999
        %1001 = vdwg.mxu0
        %1002 = vmatpush.msra.mxu0 0.0
        %1003 = vmatpush.msra.mxu0 0.0
        %1004 = vmatpush.msra.mxu0 0.0
        %1005 = vmatpush.msra.mxu0 0.0
        %1006 = vmatpush.msra.mxu0 0.0
        %1007 = vmatpush.msra.mxu0 0.0
        %1008 = vmatpush.msra.mxu0 0.0
        %1009 = vmatpush.msra.mxu0 0.0
        %1010 = vmatpush.msra.mxu0 0.0
        %1011 = vmatpush.msra.mxu0 0.0
        %1012 = vmatpush.msra.mxu0 0.0
        %1013 = vmatpush.msra.mxu0 0.0
        %1014 = vmatpush.msra.mxu0 0.0
        %1015 = vmatpush.msra.mxu0 0.0
        %1016 = vmatpush.msra.mxu0 0.0
        %1017 = vmatpush.msra.mxu0 %v851
        %1018 = vmatmul.f32.gmra.mxu0 %v940
        %v1019 = vpop.f32.mrf.mxu0
        %v1020 = vadd.f32 0.0, %v1019
        %1021 = vdwg.mxu0
        %v1022 = vmul.f32 %v960, %v567
        %v1023 = vmul.f32 %v980, %v568
        %v1024 = vmul.f32 %v1000, %v569
        %v1025 = vmul.f32 %v1020, %v570
        %v1026 = vadd.f32 %v935, %v1022
        %v1027 = vadd.f32 %v936, %v1023
        %v1028 = vadd.f32 %v937, %v1024
        %v1029 = vadd.f32 %v938, %v1025
        %1030 = vst [vmem:[%s357] sm:$0xff] %v1026
        %1031 = vst [vmem:[%s357 + $0x8] sm:$0xff] %v1027
        %1032 = vst [vmem:[%s357 + $0x10] sm:$0xff] %v1028
        %1033 = vst [vmem:[%s357 + $0x18] sm:$0xff] %v1029
        %s1034 = sand.u32 %s227, 1
        %s1035 = scalar_lea.sflag [#allocation4], %s1034
        %s1036 = sand.u32 %s227, 1
        %s1037 = smul.addr %s1036, 32
        %s1038 = scalar_lea.vmem [#allocation7], %s1037
        // Predicated region
        $region65: #{tpu_custom_call.1} parent=55 // pred_check
          %p1039 = pneg %p237
        $region66: #{tpu_custom_call.1} parent=55 // pred_check_branch
          %1041 = sbr.rel (%p1039) target = $region68
        $region67: #{tpu_custom_call.1} parent=55 // pred_region
          %1043 = vsyncadd %s1035, 0
          %s1044 = smul.addr %s25, 4
          %s1045 = smul.addr %s1044, 8
          %s1046 = scalar_lea.hbm %s9, %s1045
          %s1048 = sshll.u32 %s1038, 4
          %s1049 = int_to_ptr.vmem [resolvable:$true] %s1048
          %s1050 = sshll.u32 %s1046, 4
          %s1051 = int_to_ptr.hbm [resolvable:$true] %s1050
          %1053 = dma.vmem_to_hbm [thread:$0]  %s1049, 512, %s1051, %s1035
        $region68: #{tpu_custom_call.1} parent=55 // pred_fallthru
          _
      $region56: #{tpu_custom_call.1} parent=5 // pred_fallthru
        _
      %p1054 = scmp.le.s32.totalorder 2, %s20
      // Predicated region
      $region69: #{tpu_custom_call.1} parent=5 // pred_check
        %p1055 = pneg %p1054
      $region70: #{tpu_custom_call.1} parent=5 // pred_check_branch
        %1057 = sbr.rel (%p1055) target = $region72
      $region71: #{tpu_custom_call.1} parent=5 // pred_region
        %s1058 = ssub.s32 %s20, 2
        // Predicated region
        $region73: #{tpu_custom_call.1} parent=71 // pred_check
          %p1059 = pneg %p243
        $region74: #{tpu_custom_call.1} parent=71 // pred_check_branch
          %1061 = sbr.rel (%p1059) target = $region76
        $region75: #{tpu_custom_call.1} parent=71 // pred_region
          %s1062 = sand.u32 %s228, 1
          %s1063 = scalar_lea.sflag [#allocation4], %s1062
          %s1064 = sand.u32 %s228, 1
          %s1065 = smul.addr %s1064, 32
          %s1066 = scalar_lea.vmem [#allocation7], %s1065
          %1068 = dma.done %s1063, 512
        $region76: #{tpu_custom_call.1} parent=71 // pred_fallthru
          _
      $region72: #{tpu_custom_call.1} parent=5 // pred_fallthru
        _
    $region6: #{tpu_custom_call.1} parent=1 // loop_footer
      %s24 = sadd.s32 1, %s20
    $region7: #{tpu_custom_call.1} parent=1 // loop_footer_branch
      %19 = sbr.rel target = $region3
    $region8: #{tpu_custom_call.1} parent=1 // loop_exit
      _
    %1069 = vsyncpa [#allocation3], 1
    %s1070 = scalar_lea.sflag [#allocation3], 1
    %1071 = vsyncpa %s1070, 1
    %1072 = vsyncpa [#allocation6], 1
    %1073 = vsyncpa [#allocation4], 1
    %s1074 = scalar_lea.sflag [#allocation4], 1
    %1075 = vsyncpa %s1074, 1

</llo_original>
